<compile_context>
chip_gen: v7x
topology: tpu7x:2x2x1
jax: 0.10.0
libtpu: 0.0.40
codegen_flags: <defaults>
</compile_context>

<pallas_src>
import numpy as np
import jax
import jax.numpy as jnp
from jax import lax
from jax.experimental import pallas as pl
from jax.experimental.pallas import tpu as pltpu


def _reflect_index(n, pad=1):
    """Source indices (into [0, n)) for a reflect-pad-by-`pad` axis of length n + 2*pad."""
    idx = np.arange(-pad, n + pad)
    idx = np.where(idx < 0, -idx, idx)
    idx = np.where(idx >= n, 2 * (n - 1) - idx, idx)
    return idx


def _pick_tile_h(H, wp_pad, cin, cout, in_itemsize, budget_bytes=4 * 1024 * 1024):
    """Largest divisor of H whose (double-buffered) working set fits the VMEM budget."""
    cap = min(64, H if H < 16 else H // 2)   # prefer >=2 row tiles so the pipeline has depth
    for th in range(cap, 0, -1):
        if H % th:
            continue
        in_blk = 2 * (th + 2) * wp_pad * cin * in_itemsize      # double-buffered input block
        y_tmp = (th + 2) * wp_pad * 9 * cout * 4                # f32 fat-matmul intermediate
        out_blk = 2 * th * wp_pad * cout * 4                    # double-buffered output (upper bound)
        if in_blk + y_tmp + out_blk <= budget_bytes:
            return th
    return 1


def _conv3x3_kernel(x_ref, w_ref, b_ref, o_ref):
    # x_ref: (TH+2, Wp_pad, Cin)   padded input rows for one (batch, row-tile)
    # w_ref: (Cin, 9*Cout)         lane-dense weights; tap t = kh*3+kw occupies
    #                              columns [t*Cout, (t+1)*Cout)
    # b_ref: (1, 1, Cout)          f32 bias
    # o_ref: (TH, W, Cout)
    hh, wp, cin = x_ref.shape
    th, w_out, cout = o_ref.shape

    # One fat MXU matmul: every padded pixel against all 9 taps at once
    # (K = Cin, N = 9*Cout lanes) instead of nine (K=Cin, N=Cout) pushes.
    # wp is a sublane multiple, so this merge reshape is layout-preserving.
    y = jnp.dot(x_ref[...].reshape(hh * wp, cin), w_ref[...],
                preferred_element_type=jnp.float32)
    y = y.reshape(hh, wp, 9 * cout)

    # Accumulate the 9 shifted windows of y (static slices + VPU adds; no MXU,
    # no per-tap relayout of the input).
    acc = y[0:th, 0:w_out, 0:cout]
    for kh in range(3):
        for kw in range(3):
            t = kh * 3 + kw
            if t == 0:
                continue
            acc = acc + y[kh:kh + th, kw:kw + w_out, t * cout:(t + 1) * cout]

    acc = acc + b_ref[...]                      # bias added once, outside the tap loop
    o_ref[...] = acc.astype(o_ref.dtype)


def conv3x3_pallas_nhwc(x_nhwc, weight_oihw, bias, use_refl=True, compute_dtype=None):
    """ReflectionPad2d(1)/ZeroPad2d(1) + Conv2d(Cin, Cout, 3) on an NHWC tensor."""
    N, H, W, Cin = x_nhwc.shape
    Cout = weight_oihw.shape[0]
    assert weight_oihw.shape == (Cout, Cin, 3, 3)
    out_dtype = x_nhwc.dtype
    compute_dtype = np.dtype(out_dtype if compute_dtype is None else compute_dtype)
    itemsize = compute_dtype.itemsize

    # Pad the per-row width (W + 2 halo columns) up to a sublane multiple so the
    # in-kernel reshapes are layout-preserving. Padded columns are finite garbage
    # that the window slices never read.
    sublane = 8 * max(1, 4 // itemsize)          # 8 for f32, 16 for bf16
    wp = W + 2
    wp_pad = ((wp + sublane - 1) // sublane) * sublane

    th = _pick_tile_h(H, wp_pad, Cin, Cout, itemsize)
    n_tiles = H // th

    # Fused reflect-pad + halo row tiling: one gather producing
    # (N, n_tiles, th+2, wp_pad, Cin).  No separate padded HBM copy and no
    # overlapping BlockSpecs needed; Pallas auto-pipelines the tiles.
    hrows = np.arange(n_tiles)[:, None] * th + np.arange(th + 2)[None, :]   # padded-row ids
    if use_refl:
        ridx = _reflect_index(H)                                            # (H+2,)
        cidx = _reflect_index(W)                                            # (W+2,)
        cidx = np.concatenate([cidx, np.full(wp_pad - wp, W - 1, dtype=cidx.dtype)])
        x_tiles = x_nhwc[:, ridx[hrows]][:, :, :, cidx, :]
    else:
        xp = jnp.pad(x_nhwc, ((0, 0), (1, 1), (1, 1 + wp_pad - wp), (0, 0)))
        x_tiles = xp[:, hrows]
    x_tiles = x_tiles.astype(compute_dtype)

    # Lane-dense weights: (Cin, 9*Cout), tap t = kh*3+kw.
    w_fat = jnp.transpose(weight_oihw, (1, 2, 3, 0)).reshape(Cin, 9 * Cout)
    w_fat = w_fat.astype(compute_dtype)
    b3 = bias.reshape(1, 1, Cout).astype(jnp.float32)

    out = pl.pallas_call(
        _conv3x3_kernel,
        out_shape=jax.ShapeDtypeStruct((N, H, W, Cout), out_dtype),
        grid=(N, n_tiles),
        in_specs=[
            pl.BlockSpec((None, None, th + 2, wp_pad, Cin),
                         lambda n, i: (n, i, 0, 0, 0)),
            pl.BlockSpec((Cin, 9 * Cout), lambda n, i: (0, 0)),     # resident across steps
            pl.BlockSpec((1, 1, Cout), lambda n, i: (0, 0, 0)),     # resident across steps
        ],
        out_specs=pl.BlockSpec((None, th, W, Cout), lambda n, i: (n, i, 0, 0)),
        compiler_params=pltpu.CompilerParams(
            dimension_semantics=("parallel", "parallel"),
            vmem_limit_bytes=32 * 1024 * 1024,
        ),
    )(x_tiles, w_fat, b3)
    return out


def conv3x3_pallas(x_nchw, weight_oihw, bias, use_refl=True, compute_dtype=None):
    """PyTorch-layout entry point (Conv3x3.forward): NCHW in, NCHW out."""
    x_nhwc = jnp.transpose(x_nchw, (0, 2, 3, 1))
    out_nhwc = conv3x3_pallas_nhwc(x_nhwc, weight_oihw, bias,
                                   use_refl=use_refl, compute_dtype=compute_dtype)
    return jnp.transpose(out_nhwc, (0, 3, 1, 2))


if __name__ == "__main__":
    key = jax.random.PRNGKey(0)
    k_x, k_w, k_b = jax.random.split(key, 3)

    N, Cin, H, W = 2, 4, 16, 16
    Cout = 8

    x = jax.random.normal(k_x, (N, Cin, H, W), dtype=jnp.float32)
    # Deterministic synthetic parameters (same shapes as nn.Conv2d(Cin, Cout, 3)).
    weight = jax.random.normal(k_w, (Cout, Cin, 3, 3), dtype=jnp.float32) * 0.1
    bias = jax.random.normal(k_b, (Cout,), dtype=jnp.float32) * 0.1

    def ref_conv(x_nchw, pad_mode):
        xp = jnp.pad(x_nchw, ((0, 0), (0, 0), (1, 1), (1, 1)), mode=pad_mode)
        return lax.conv_general_dilated(
            xp, weight, window_strides=(1, 1), padding="VALID",
            dimension_numbers=("NCHW", "OIHW", "NCHW"),
        ) + bias[None, :, None, None]

    # Reflection pad, f32 compute.
    out = jax.block_until_ready(conv3x3_pallas(x, weight, bias, use_refl=True))
    ref = ref_conv(x, "reflect")
    assert out.shape == (N, Cout, H, W), out.shape
    assert jnp.allclose(out, ref, atol=1e-4, rtol=1e-4), float(jnp.max(jnp.abs(out - ref)))

    # Zero pad, f32 compute.
    out0 = jax.block_until_ready(conv3x3_pallas(x, weight, bias, use_refl=False))
    ref0 = ref_conv(x, "constant")
    assert jnp.allclose(out0, ref0, atol=1e-4, rtol=1e-4), float(jnp.max(jnp.abs(out0 - ref0)))

    # bf16 compute path (v6e/v7x fast path): f32 accumulation, looser tolerance.
    out_bf16 = jax.block_until_ready(
        conv3x3_pallas(x, weight, bias, use_refl=True, compute_dtype=jnp.bfloat16))
    assert jnp.allclose(out_bf16, ref, atol=3e-2, rtol=3e-2), float(
        jnp.max(jnp.abs(out_bf16 - ref)))

    print("KERNEL_OK")
</pallas_src>

<mosaic_0001>
module attributes {stable_mosaic.version = 11 : i64} {
  func.func @_conv3x3_kernel(%arg0: i32, %arg1: i32, %arg2: memref<1x1x10x24x4xf32, #tpu.memory_space<vmem>>, %arg3: memref<4x72xf32, #tpu.memory_space<vmem>>, %arg4: memref<1x1x8xf32, #tpu.memory_space<vmem>>, %arg5: memref<1x8x16x8xf32, #tpu.memory_space<vmem>>) attributes {dimension_semantics = [#tpu.dimension_semantics<parallel>, #tpu.dimension_semantics<parallel>], iteration_bounds = array<i64: 2, 2>, scalar_prefetch = 0 : i64, scratch_operands = 0 : i64, tpu.core_type = #tpu.core_type<tc>, window_params = [{transform_indices = @transform_0, window_bounds = array<i64: 1, 1, 10, 24, 4>}, {pipeline_mode = #tpu.pipeline_mode<synchronous>, transform_indices = @transform_1, window_bounds = array<i64: 4, 72>}, {pipeline_mode = #tpu.pipeline_mode<synchronous>, transform_indices = @transform_2, window_bounds = array<i64: 1, 1, 8>}, {transform_indices = @transform_3, window_bounds = array<i64: 1, 8, 16, 8>}]} {
    %c0 = arith.constant 0 : index
    %c0_0 = arith.constant 0 : index
    %c0_1 = arith.constant 0 : index
    %c0_2 = arith.constant 0 : index
    %c0_3 = arith.constant 0 : index
    %0 = vector.load %arg2[%c0, %c0_0, %c0_1, %c0_2, %c0_3] : memref<1x1x10x24x4xf32, #tpu.memory_space<vmem>>, vector<1x1x10x24x4xf32>
    %1 = vector.shape_cast %0 : vector<1x1x10x24x4xf32> to vector<10x24x4xf32>
    %2 = vector.shape_cast %1 : vector<10x24x4xf32> to vector<240x4xf32>
    %c0_4 = arith.constant 0 : index
    %c0_5 = arith.constant 0 : index
    %3 = vector.load %arg3[%c0_4, %c0_5] : memref<4x72xf32, #tpu.memory_space<vmem>>, vector<4x72xf32>
    %cst = arith.constant dense<0.000000e+00> : vector<240x72xf32>
    %4 = tpu.matmul %2, %3, %cst {dimension_numbers = #tpu.dot_dimension_numbers<[1], [0], [0], [1], [0, 0, 1, 1], [], []>} : vector<240x4xf32>, vector<4x72xf32>, vector<240x72xf32> -> vector<240x72xf32>
    %5 = vector.shape_cast %4 : vector<240x72xf32> to vector<10x24x72xf32>
    %6 = vector.extract_strided_slice %5 {offsets = [0, 0, 0], sizes = [8, 16, 8], strides = [1, 1, 1]} : vector<10x24x72xf32> to vector<8x16x8xf32>
    %7 = vector.extract_strided_slice %5 {offsets = [0, 1, 8], sizes = [8, 16, 8], strides = [1, 1, 1]} : vector<10x24x72xf32> to vector<8x16x8xf32>
    %8 = arith.addf %6, %7 : vector<8x16x8xf32>
    %9 = vector.extract_strided_slice %5 {offsets = [0, 2, 16], sizes = [8, 16, 8], strides = [1, 1, 1]} : vector<10x24x72xf32> to vector<8x16x8xf32>
    %10 = arith.addf %8, %9 : vector<8x16x8xf32>
    %11 = vector.extract_strided_slice %5 {offsets = [1, 0, 24], sizes = [8, 16, 8], strides = [1, 1, 1]} : vector<10x24x72xf32> to vector<8x16x8xf32>
    %12 = arith.addf %10, %11 : vector<8x16x8xf32>
    %13 = vector.extract_strided_slice %5 {offsets = [1, 1, 32], sizes = [8, 16, 8], strides = [1, 1, 1]} : vector<10x24x72xf32> to vector<8x16x8xf32>
    %14 = arith.addf %12, %13 : vector<8x16x8xf32>
    %15 = vector.extract_strided_slice %5 {offsets = [1, 2, 40], sizes = [8, 16, 8], strides = [1, 1, 1]} : vector<10x24x72xf32> to vector<8x16x8xf32>
    %16 = arith.addf %14, %15 : vector<8x16x8xf32>
    %17 = vector.extract_strided_slice %5 {offsets = [2, 0, 48], sizes = [8, 16, 8], strides = [1, 1, 1]} : vector<10x24x72xf32> to vector<8x16x8xf32>
    %18 = arith.addf %16, %17 : vector<8x16x8xf32>
    %19 = vector.extract_strided_slice %5 {offsets = [2, 1, 56], sizes = [8, 16, 8], strides = [1, 1, 1]} : vector<10x24x72xf32> to vector<8x16x8xf32>
    %20 = arith.addf %18, %19 : vector<8x16x8xf32>
    %21 = vector.extract_strided_slice %5 {offsets = [2, 2, 64], sizes = [8, 16, 8], strides = [1, 1, 1]} : vector<10x24x72xf32> to vector<8x16x8xf32>
    %22 = arith.addf %20, %21 : vector<8x16x8xf32>
    %c0_6 = arith.constant 0 : index
    %c0_7 = arith.constant 0 : index
    %c0_8 = arith.constant 0 : index
    %23 = vector.load %arg4[%c0_6, %c0_7, %c0_8] : memref<1x1x8xf32, #tpu.memory_space<vmem>>, vector<1x1x8xf32>
    %24 = vector.broadcast %23 : vector<1x1x8xf32> to vector<8x16x8xf32>
    %25 = arith.addf %22, %24 : vector<8x16x8xf32>
    %c0_9 = arith.constant 0 : index
    %c0_10 = arith.constant 0 : index
    %c0_11 = arith.constant 0 : index
    %c0_12 = arith.constant 0 : index
    %26 = vector.load %arg5[%c0_9, %c0_10, %c0_11, %c0_12] : memref<1x8x16x8xf32, #tpu.memory_space<vmem>>, vector<1x8x16x8xf32>
    %27 = vector.shape_cast %26 : vector<1x8x16x8xf32> to vector<8x16x8xf32>
    %28 = vector.shape_cast %25 : vector<8x16x8xf32> to vector<1x8x16x8xf32>
    tpu.vector_store %arg5[%c0_9, %c0_10, %c0_11, %c0_12], %28 {strides = array<i32>} : memref<1x8x16x8xf32, #tpu.memory_space<vmem>>, vector<1x8x16x8xf32>,
    return
  }
  func.func @transform_0(%arg0: i32, %arg1: i32) -> (i32, i32, i32, i32, i32) {
    %c0_i32 = arith.constant 0 : i32
    %c0_i32_0 = arith.constant 0 : i32
    %c0_i32_1 = arith.constant 0 : i32
    %c0_i32_2 = arith.constant 0 : i32
    return %arg0, %arg1, %c0_i32, %c0_i32_0, %c0_i32_1 : i32, i32, i32, i32, i32
  }
  func.func @transform_1(%arg0: i32, %arg1: i32) -> (i32, i32) {
    %c0_i32 = arith.constant 0 : i32
    %c0_i32_0 = arith.constant 0 : i32
    %c0_i32_1 = arith.constant 0 : i32
    return %c0_i32, %c0_i32_0 : i32, i32
  }
  func.func @transform_2(%arg0: i32, %arg1: i32) -> (i32, i32, i32) {
    %c0_i32 = arith.constant 0 : i32
    %c0_i32_0 = arith.constant 0 : i32
    %c0_i32_1 = arith.constant 0 : i32
    %c0_i32_2 = arith.constant 0 : i32
    return %c0_i32, %c0_i32_0, %c0_i32_1 : i32, i32, i32
  }
  func.func @transform_3(%arg0: i32, %arg1: i32) -> (i32, i32, i32, i32) {
    %c0_i32 = arith.constant 0 : i32
    %c0_i32_0 = arith.constant 0 : i32
    %c0_i32_1 = arith.constant 0 : i32
    return %arg0, %arg1, %c0_i32, %c0_i32_0 : i32, i32, i32, i32
  }
}

</mosaic_0001>

<llo_original>
// kernel: tpu_custom_call.1
$region0: #{tpu_custom_call.1}
  #allocation0 [shape = 'u32[]', space=smem, size = 0x4, offset = 0x4, fixed_abs, tag = 'smem constant byte address 0x4 - core index']
  #allocation1 [shape = 'u32[144,128]{1,0:T(1,128)}', space=vmem, size = 0x12000, scoped, tag = 'internal scratch']
  %s0 = inlined_call_operand.vmem [shape: f32[2,2,10,24,4], index: 0, kind: input, shape index: {}]
  %s1 = inlined_call_operand.vmem [shape: f32[4,72], index: 1, kind: input, shape index: {}]
  %s2 = inlined_call_operand.vmem [shape: f32[1,1,8], index: 2, kind: input, shape index: {}]
  %s3 = inlined_call_operand.vmem [shape: f32[2,16,16,8], index: 3, kind: output, shape index: {}]
  %s4 = sld [smem:[#allocation0]]
  $region45: #{tpu_custom_call.1} parent=0
    _
  %s6 = ssub.s32 1, %s4
  %s7 = scalar_select 0, %s6, %s4
  loop: start=0, step=1, limit=6
  $region2: #{tpu_custom_call.1} parent=0 // loop_pre_header
    _
  $region3: #{tpu_custom_call.1} parent=0 // loop_header
    %s9 = sphi 0, %s13
    %p10 = scmp.ge.s32.totalorder %s9, 6
    %s16 = sphi 0, %s28
    %s17 = sphi 0, %s24
    %s18 = sphi 0, %s16
    %s19 = sphi 0, %s17
    %s20 = sphi 0, %s18
    %s21 = sphi 0, %s19
    %s33 = sphi 0, %s35
    %s36 = sphi 0, %s33
    %s37 = sphi 0, %s36
    %s53 = sphi 0, %s37
    %s57 = sphi 0, %s57
    %s59 = sphi 0, %s57
    %s60 = sphi 0, %s59
    %s74 = sphi 0, %s60
    %s78 = sphi 0, %s78
    %s80 = sphi 0, %s78
    %s81 = sphi 0, %s80
    %s95 = sphi 0, %s81
    %s103 = sphi 0, %s105
    %s106 = sphi 0, %s103
    %s107 = sphi 0, %s106
    %s123 = sphi 0, %s107
  $region4: #{tpu_custom_call.1} parent=0 // loop_header_branch
    %12 = sbr.rel (%p10) target = $region8
  $region5: #{tpu_custom_call.1} parent=0 // loop_body
    %s14 = ssub.s32 %s9, 1
    %s15 = ssub.s32 %s9, 2
    %s22 = sadd.s32 1, %s17
    %p23 = scmp.ge.s32.totalorder %s22, 2
    %s24 = scalar_select %p23, 0, %s22
    %s25 = sadd.s32 1, %s16
    %s26 = scalar_select %p23, %s25, %s16
    %p27 = scmp.ge.s32.totalorder %s26, 2
    %s28 = scalar_select %p27, 0, %s26
    %s29 = ssub.s32 %s16, %s28
    %s30 = ssub.s32 %s17, %s24
    %s31 = sor.u32 %s29, %s30
    %p32 = scmp.eq.s32.totalorder %s31, 0
    %s34 = sadd.s32 %s33, 1
    %s35 = scalar_select %p32, %s33, %s34
    %p38 = pneg %p32
    %p39 = scmp.eq.s32.totalorder %s9, 3
    %p40 = por %p38, %p39
    %p41 = scmp.ne.s32.totalorder %s33, %s36
    %p42 = scmp.eq.s32.totalorder %s9, 0
    %p43 = por %p41, %p42
    %p44 = scmp.ne.s32.totalorder %s33, %s36
    %p45 = scmp.eq.s32.totalorder %s14, 3
    %p46 = por %p44, %p45
    %p47 = scmp.ne.s32.totalorder %s36, %s37
    %p48 = scmp.eq.s32.totalorder %s14, 0
    %p49 = por %p47, %p48
    %p50 = scmp.ne.s32.totalorder %s36, %s37
    %p51 = scmp.eq.s32.totalorder %s15, 3
    %p52 = por %p50, %p51
    %p54 = scmp.ne.s32.totalorder %s37, %s53
    %p55 = scmp.eq.s32.totalorder %s15, 0
    %p56 = por %p54, %p55
    %s58 = sadd.s32 %s57, 1
    %p61 = scmp.eq.s32.totalorder %s9, 3
    %p62 = scmp.ne.s32.totalorder %s57, %s59
    %p63 = scmp.eq.s32.totalorder %s9, 0
    %p64 = por %p62, %p63
    %p65 = scmp.ne.s32.totalorder %s57, %s59
    %p66 = scmp.eq.s32.totalorder %s14, 3
    %p67 = por %p65, %p66
    %p68 = scmp.ne.s32.totalorder %s59, %s60
    %p69 = scmp.eq.s32.totalorder %s14, 0
    %p70 = por %p68, %p69
    %p71 = scmp.ne.s32.totalorder %s59, %s60
    %p72 = scmp.eq.s32.totalorder %s15, 3
    %p73 = por %p71, %p72
    %p75 = scmp.ne.s32.totalorder %s60, %s74
    %p76 = scmp.eq.s32.totalorder %s15, 0
    %p77 = por %p75, %p76
    %s79 = sadd.s32 %s78, 1
    %p82 = scmp.eq.s32.totalorder %s9, 3
    %p83 = scmp.ne.s32.totalorder %s78, %s80
    %p84 = scmp.eq.s32.totalorder %s9, 0
    %p85 = por %p83, %p84
    %p86 = scmp.ne.s32.totalorder %s78, %s80
    %p87 = scmp.eq.s32.totalorder %s14, 3
    %p88 = por %p86, %p87
    %p89 = scmp.ne.s32.totalorder %s80, %s81
    %p90 = scmp.eq.s32.totalorder %s14, 0
    %p91 = por %p89, %p90
    %p92 = scmp.ne.s32.totalorder %s80, %s81
    %p93 = scmp.eq.s32.totalorder %s15, 3
    %p94 = por %p92, %p93
    %p96 = scmp.ne.s32.totalorder %s81, %s95
    %p97 = scmp.eq.s32.totalorder %s15, 0
    %p98 = por %p96, %p97
    %s99 = ssub.s32 %s16, %s28
    %s100 = ssub.s32 %s17, %s24
    %s101 = sor.u32 %s99, %s100
    %p102 = scmp.eq.s32.totalorder %s101, 0
    %s104 = sadd.s32 %s103, 1
    %s105 = scalar_select %p102, %s103, %s104
    %p108 = pneg %p102
    %p109 = scmp.eq.s32.totalorder %s9, 3
    %p110 = por %p108, %p109
    %p111 = scmp.ne.s32.totalorder %s103, %s106
    %p112 = scmp.eq.s32.totalorder %s9, 0
    %p113 = por %p111, %p112
    %p114 = scmp.ne.s32.totalorder %s103, %s106
    %p115 = scmp.eq.s32.totalorder %s14, 3
    %p116 = por %p114, %p115
    %p117 = scmp.ne.s32.totalorder %s106, %s107
    %p118 = scmp.eq.s32.totalorder %s14, 0
    %p119 = por %p117, %p118
    %p120 = scmp.ne.s32.totalorder %s106, %s107
    %p121 = scmp.eq.s32.totalorder %s15, 3
    %p122 = por %p120, %p121
    %p124 = scmp.ne.s32.totalorder %s107, %s123
    %p125 = scmp.eq.s32.totalorder %s15, 0
    %p126 = por %p124, %p125
    %p127 = scmp.le.s32.totalorder 1, %s9
    %p128 = scmp.lt.s32.totalorder %s9, 5
    %p129 = pnand %p127, %p128
    %p130 = pneg %p129
    // Predicated region
    $region9: #{tpu_custom_call.1} parent=5 // pred_check
      _
    $region10: #{tpu_custom_call.1} parent=5 // pred_check_branch
      %132 = sbr.rel (%p129) target = $region12
    $region11: #{tpu_custom_call.1} parent=5 // pred_region
      %s133 = ssub.s32 %s9, 1
      // Predicated region
      $region13: #{tpu_custom_call.1} parent=11 // pred_check
        %p134 = pneg %p70
      $region14: #{tpu_custom_call.1} parent=11 // pred_check_branch
        %136 = sbr.rel (%p134) target = $region16
      $region15: #{tpu_custom_call.1} parent=11 // pred_region
        _
      $region16: #{tpu_custom_call.1} parent=11 // pred_fallthru
        _
      // Predicated region
      $region17: #{tpu_custom_call.1} parent=11 // pred_check
        %p137 = pneg %p91
      $region18: #{tpu_custom_call.1} parent=11 // pred_check_branch
        %139 = sbr.rel (%p137) target = $region20
      $region19: #{tpu_custom_call.1} parent=11 // pred_region
        _
      $region20: #{tpu_custom_call.1} parent=11 // pred_fallthru
        _
    $region12: #{tpu_custom_call.1} parent=5 // pred_fallthru
      _
    %p140 = scmp.lt.s32.totalorder %s9, 4
    // Predicated region
    $region21: #{tpu_custom_call.1} parent=5 // pred_check
      %p141 = pneg %p140
    $region22: #{tpu_custom_call.1} parent=5 // pred_check_branch
      %143 = sbr.rel (%p141) target = $region24
    $region23: #{tpu_custom_call.1} parent=5 // pred_region
      // Predicated region
      $region25: #{tpu_custom_call.1} parent=23 // pred_check
        %p144 = pneg %p43
      $region26: #{tpu_custom_call.1} parent=23 // pred_check_branch
        %146 = sbr.rel (%p144) target = $region28
      $region27: #{tpu_custom_call.1} parent=23 // pred_region
        %p147 = scmp.lt.s32.totalorder %s16, 1
        %s148 = scalar_select %p147, %s16, 1
        %p149 = scmp.lt.s32.totalorder %s17, 1
        %s150 = scalar_select %p149, %s17, 1
        %s151 = smul.addr %s150, 30
        %s152 = smul.addr %s148, 60
        %s153 = sadd.s32 %s151, %s152
        %s154 = smul.addr %s153, 8
        %s155 = scalar_lea.vmem %s0, %s154
      $region28: #{tpu_custom_call.1} parent=23 // pred_fallthru
        _
    $region24: #{tpu_custom_call.1} parent=5 // pred_fallthru
      _
    %p156 = scmp.le.s32.totalorder 1, %s9
    %p157 = scmp.lt.s32.totalorder %s9, 5
    %p158 = pnand %p156, %p157
    %p159 = pneg %p158
    // Predicated region
    $region29: #{tpu_custom_call.1} parent=5 // pred_check
      _
    $region30: #{tpu_custom_call.1} parent=5 // pred_check_branch
      %161 = sbr.rel (%p158) target = $region32
    $region31: #{tpu_custom_call.1} parent=5 // pred_region
      %s162 = ssub.s32 %s9, 1
      %p163 = scmp.lt.s32.totalorder %s18, 1
      %s164 = scalar_select %p163, %s18, 1
      %p165 = scmp.lt.s32.totalorder %s19, 1
      %s166 = scalar_select %p165, %s19, 1
      %s167 = smul.addr %s166, 30
      %s168 = smul.addr %s164, 60
      %s169 = sadd.s32 %s167, %s168
      %s170 = smul.addr %s169, 8
      %s171 = scalar_lea.vmem %s0, %s170
      %p172 = pneg %p49
      %p173 = pneg %p46
      %p174 = pneg %p70
      %p175 = pneg %p67
      %p176 = pneg %p91
      %p177 = pneg %p88
      %p178 = pneg %p119
      %p179 = pneg %p116
      %s180 = smul.u32 8, %s19
      %p181 = scmp.lt.s32.totalorder %s18, 1
      %s182 = scalar_select %p181, %s18, 1
      %p183 = scmp.lt.s32.totalorder %s180, 15
      %s184 = scalar_select %p183, %s180, 15
      %s185 = smul.addr %s184, 2
      %s186 = smul.addr %s182, 32
      %s187 = sadd.s32 %s185, %s186
      %s188 = smul.addr %s187, 8
      %s189 = scalar_lea.vmem %s3, %s188
      %p190 = scmp.lt.s32.totalorder %s18, 1
      %s191 = scalar_select %p190, %s18, 1
      %p192 = scmp.lt.s32.totalorder %s19, 1
      %s193 = scalar_select %p192, %s19, 1
      %s194 = smul.addr %s193, 30
      %s195 = smul.addr %s191, 60
      %s196 = sadd.s32 %s194, %s195
      %s197 = smul.addr %s196, 8
      %s198 = scalar_lea.vmem %s0, %s197
      %s199 = smul.u32 8, %s19
      %p200 = scmp.lt.s32.totalorder %s18, 1
      %s201 = scalar_select %p200, %s18, 1
      %p202 = scmp.lt.s32.totalorder %s199, 15
      %s203 = scalar_select %p202, %s199, 15
      %s204 = smul.addr %s203, 2
      %s205 = smul.addr %s201, 32
      %s206 = sadd.s32 %s204, %s205
      %s207 = smul.addr %s206, 8
      %s208 = scalar_lea.vmem %s3, %s207
      %s209 = smul.u32 8, %s19
      %v210 = vld [vmem:[%s198] sm:$0xff]
      %v211 = vld [vmem:[%s198 + $0x8] sm:$0xff]
      %v212 = vld [vmem:[%s198 + $0x10] sm:$0xff]
      %v213 = vld [vmem:[%s198 + $0x18] sm:$0xff]
      %v214 = vld [vmem:[%s198 + $0x20] sm:$0xff]
      %v215 = vld [vmem:[%s198 + $0x28] sm:$0xff]
      %v216 = vld [vmem:[%s198 + $0x30] sm:$0xff]
      %v217 = vld [vmem:[%s198 + $0x38] sm:$0xff]
      %v218 = vld [vmem:[%s198 + $0x40] sm:$0xff]
      %v219 = vld [vmem:[%s198 + $0x48] sm:$0xff]
      %v220 = vld [vmem:[%s198 + $0x50] sm:$0xff]
      %v221 = vld [vmem:[%s198 + $0x58] sm:$0xff]
      %v222 = vld [vmem:[%s198 + $0x60] sm:$0xff]
      %v223 = vld [vmem:[%s198 + $0x68] sm:$0xff]
      %v224 = vld [vmem:[%s198 + $0x70] sm:$0xff]
      %v225 = vld [vmem:[%s198 + $0x78] sm:$0xff]
      %v226 = vld [vmem:[%s198 + $0x80] sm:$0xff]
      %v227 = vld [vmem:[%s198 + $0x88] sm:$0xff]
      %v228 = vld [vmem:[%s198 + $0x90] sm:$0xff]
      %v229 = vld [vmem:[%s198 + $0x98] sm:$0xff]
      %v230 = vld [vmem:[%s198 + $0xa0] sm:$0xff]
      %v231 = vld [vmem:[%s198 + $0xa8] sm:$0xff]
      %v232 = vld [vmem:[%s198 + $0xb0] sm:$0xff]
      %v233 = vld [vmem:[%s198 + $0xb8] sm:$0xff]
      %v234 = vld [vmem:[%s198 + $0xc0] sm:$0xff]
      %v235 = vld [vmem:[%s198 + $0xc8] sm:$0xff]
      %v236 = vld [vmem:[%s198 + $0xd0] sm:$0xff]
      %v237 = vld [vmem:[%s198 + $0xd8] sm:$0xff]
      %v238 = vld [vmem:[%s198 + $0xe0] sm:$0xff]
      %v239 = vld [vmem:[%s198 + $0xe8] sm:$0xff]
      %v240 = vld [vmem:[%s1] sm:$0xf]
      %vm241 = vcmask 31744
      %v243 = vsel %vm241, %v210, 0
      %v246 = vsel %vm241, %v211, 0
      %v249 = vsel %vm241, %v212, 0
      %v252 = vsel %vm241, %v213, 0
      %v255 = vsel %vm241, %v214, 0
      %v258 = vsel %vm241, %v215, 0
      %v261 = vsel %vm241, %v216, 0
      %v264 = vsel %vm241, %v217, 0
      %v267 = vsel %vm241, %v218, 0
      %v270 = vsel %vm241, %v219, 0
      %v273 = vsel %vm241, %v220, 0
      %v276 = vsel %vm241, %v221, 0
      %v279 = vsel %vm241, %v222, 0
      %v282 = vsel %vm241, %v223, 0
      %v285 = vsel %vm241, %v224, 0
      %v288 = vsel %vm241, %v225, 0
      %v291 = vsel %vm241, %v226, 0
      %v294 = vsel %vm241, %v227, 0
      %v297 = vsel %vm241, %v228, 0
      %v300 = vsel %vm241, %v229, 0
      %v303 = vsel %vm241, %v230, 0
      %v306 = vsel %vm241, %v231, 0
      %v309 = vsel %vm241, %v232, 0
      %v312 = vsel %vm241, %v233, 0
      %v315 = vsel %vm241, %v234, 0
      %v318 = vsel %vm241, %v235, 0
      %v321 = vsel %vm241, %v236, 0
      %v324 = vsel %vm241, %v237, 0
      %v327 = vsel %vm241, %v238, 0
      %v330 = vsel %vm241, %v239, 0
      %vm332 = vcmask 1043456
      %v334 = vsel %vm332, %v240, 0
      %336 = vmatprep.subr.mxu0 0.0
      %337 = vmatpush1.msra.mxu0 %v334
      %338 = vmatprep.subr.mxu0 0.0
      %339 = vmatpush1.msra.mxu0 0.0
      %340 = vmatprep.subr.mxu0 0.0
      %341 = vmatpush1.msra.mxu0 0.0
      %342 = vmatprep.subr.mxu0 0.0
      %343 = vmatpush1.msra.mxu0 0.0
      %344 = vmatprep.subr.mxu0 0.0
      %345 = vmatpush1.msra.mxu0 0.0
      %346 = vmatprep.subr.mxu0 0.0
      %347 = vmatpush1.msra.mxu0 0.0
      %348 = vmatprep.subr.mxu0 0.0
      %349 = vmatpush1.msra.mxu0 0.0
      %350 = vmatprep.subr.mxu0 0.0
      %351 = vmatpush1.msra.mxu0 0.0
      %352 = vmatprep.subr.mxu0 0.0
      %353 = vmatpush1.msra.mxu0 0.0
      %354 = vmatprep.subr.mxu0 0.0
      %355 = vmatpush1.msra.mxu0 0.0
      %356 = vmatprep.subr.mxu0 0.0
      %357 = vmatpush1.msra.mxu0 0.0
      %358 = vmatprep.subr.mxu0 0.0
      %359 = vmatpush1.msra.mxu0 0.0
      %360 = vmatprep.subr.mxu0 0.0
      %361 = vmatpush1.msra.mxu0 0.0
      %362 = vmatprep.subr.mxu0 0.0
      %363 = vmatpush1.msra.mxu0 0.0
      %364 = vmatprep.subr.mxu0 0.0
      %365 = vmatpush1.msra.mxu0 0.0
      %366 = vmatprep.subr.mxu0 0.0
      %367 = vmatpush1.msra.mxu0 0.0
      %368 = vmatprep.subr.mxu0 0.0
      %369 = vmatpush1.msra.mxu0 0.0
      %370 = vmatprep.subr.mxu0 0.0
      %371 = vmatpush1.msra.mxu0 0.0
      %372 = vmatprep.subr.mxu0 0.0
      %373 = vmatpush1.msra.mxu0 0.0
      %374 = vmatprep.subr.mxu0 0.0
      %375 = vmatpush1.msra.mxu0 0.0
      %376 = vmatprep.subr.mxu0 0.0
      %377 = vmatpush1.msra.mxu0 0.0
      %378 = vmatprep.subr.mxu0 0.0
      %379 = vmatpush1.msra.mxu0 0.0
      %380 = vmatprep.subr.mxu0 0.0
      %381 = vmatpush1.msra.mxu0 0.0
      %382 = vmatprep.subr.mxu0 0.0
      %383 = vmatpush1.msra.mxu0 0.0
      %384 = vmatprep.subr.mxu0 0.0
      %385 = vmatpush1.msra.mxu0 0.0
      %386 = vmatprep.subr.mxu0 0.0
      %387 = vmatpush1.msra.mxu0 0.0
      %388 = vmatprep.subr.mxu0 0.0
      %389 = vmatpush1.msra.mxu0 0.0
      %390 = vmatprep.subr.mxu0 0.0
      %391 = vmatpush1.msra.mxu0 0.0
      %392 = vmatprep.subr.mxu0 0.0
      %393 = vmatpush1.msra.mxu0 0.0
      %394 = vmatprep.subr.mxu0 0.0
      %395 = vmatpush1.msra.mxu0 0.0
      %396 = vmatprep.subr.mxu0 0.0
      %397 = vmatpush1.msra.mxu0 0.0
      %398 = vmatprep.subr.mxu0 0.0
      %399 = vmatpush1.msra.mxu0 0.0
      %400 = vmatprep.mubr.f32.mxu0 0.0
      %401 = vmatmul.mubr.f32.gmra.mrb[0].mxu0 %v243
      %v402 = vpop.f32.mrb[0].mxu0
      %v403 = vadd.f32 0.0, %v402
      %v404 = vpop.f32.mrb[0].mxu0
      %405 = vmatprep.mubr.f32.mxu0 0.0
      %406 = vmatmul.mubr.f32.gmra.mrb[0].mxu0 %v246
      %v407 = vpop.f32.mrb[0].mxu0
      %v408 = vadd.f32 0.0, %v407
      %v409 = vpop.f32.mrb[0].mxu0
      %410 = vmatprep.mubr.f32.mxu0 0.0
      %411 = vmatmul.mubr.f32.gmra.mrb[0].mxu0 %v249
      %v412 = vpop.f32.mrb[0].mxu0
      %v413 = vadd.f32 0.0, %v412
      %v414 = vpop.f32.mrb[0].mxu0
      %415 = vmatprep.mubr.f32.mxu0 0.0
      %416 = vmatmul.mubr.f32.gmra.mrb[0].mxu0 %v252
      %v417 = vpop.f32.mrb[0].mxu0
      %v418 = vadd.f32 0.0, %v417
      %v419 = vpop.f32.mrb[0].mxu0
      %420 = vmatprep.mubr.f32.mxu0 0.0
      %421 = vmatmul.mubr.f32.gmra.mrb[0].mxu0 %v255
      %v422 = vpop.f32.mrb[0].mxu0
      %v423 = vadd.f32 0.0, %v422
      %v424 = vpop.f32.mrb[0].mxu0
      %425 = vmatprep.mubr.f32.mxu0 0.0
      %426 = vmatmul.mubr.f32.gmra.mrb[0].mxu0 %v258
      %v427 = vpop.f32.mrb[0].mxu0
      %v428 = vadd.f32 0.0, %v427
      %v429 = vpop.f32.mrb[0].mxu0
      %430 = vmatprep.mubr.f32.mxu0 0.0
      %431 = vmatmul.mubr.f32.gmra.mrb[0].mxu0 %v261
      %v432 = vpop.f32.mrb[0].mxu0
      %v433 = vadd.f32 0.0, %v432
      %v434 = vpop.f32.mrb[0].mxu0
      %435 = vmatprep.mubr.f32.mxu0 0.0
      %436 = vmatmul.mubr.f32.gmra.mrb[0].mxu0 %v264
      %v437 = vpop.f32.mrb[0].mxu0
      %v438 = vadd.f32 0.0, %v437
      %v439 = vpop.f32.mrb[0].mxu0
      %440 = vmatprep.mubr.f32.mxu0 0.0
      %441 = vmatmul.mubr.f32.gmra.mrb[0].mxu0 %v267
      %v442 = vpop.f32.mrb[0].mxu0
      %v443 = vadd.f32 0.0, %v442
      %v444 = vpop.f32.mrb[0].mxu0
      %445 = vmatprep.mubr.f32.mxu0 0.0
      %446 = vmatmul.mubr.f32.gmra.mrb[0].mxu0 %v270
      %v447 = vpop.f32.mrb[0].mxu0
      %v448 = vadd.f32 0.0, %v447
      %v449 = vpop.f32.mrb[0].mxu0
      %450 = vmatprep.mubr.f32.mxu0 0.0
      %451 = vmatmul.mubr.f32.gmra.mrb[0].mxu0 %v273
      %v452 = vpop.f32.mrb[0].mxu0
      %v453 = vadd.f32 0.0, %v452
      %v454 = vpop.f32.mrb[0].mxu0
      %455 = vmatprep.mubr.f32.mxu0 0.0
      %456 = vmatmul.mubr.f32.gmra.mrb[0].mxu0 %v276
      %v457 = vpop.f32.mrb[0].mxu0
      %v458 = vadd.f32 0.0, %v457
      %v459 = vpop.f32.mrb[0].mxu0
      %460 = vmatprep.mubr.f32.mxu0 0.0
      %461 = vmatmul.mubr.f32.gmra.mrb[0].mxu0 %v279
      %v462 = vpop.f32.mrb[0].mxu0
      %v463 = vadd.f32 0.0, %v462
      %v464 = vpop.f32.mrb[0].mxu0
      %465 = vmatprep.mubr.f32.mxu0 0.0
      %466 = vmatmul.mubr.f32.gmra.mrb[0].mxu0 %v282
      %v467 = vpop.f32.mrb[0].mxu0
      %v468 = vadd.f32 0.0, %v467
      %v469 = vpop.f32.mrb[0].mxu0
      %470 = vmatprep.mubr.f32.mxu0 0.0
      %471 = vmatmul.mubr.f32.gmra.mrb[0].mxu0 %v285
      %v472 = vpop.f32.mrb[0].mxu0
      %v473 = vadd.f32 0.0, %v472
      %v474 = vpop.f32.mrb[0].mxu0
      %475 = vmatprep.mubr.f32.mxu0 0.0
      %476 = vmatmul.mubr.f32.gmra.mrb[0].mxu0 %v288
      %v477 = vpop.f32.mrb[0].mxu0
      %v478 = vadd.f32 0.0, %v477
      %v479 = vpop.f32.mrb[0].mxu0
      %480 = vmatprep.mubr.f32.mxu0 0.0
      %481 = vmatmul.mubr.f32.gmra.mrb[0].mxu0 %v291
      %v482 = vpop.f32.mrb[0].mxu0
      %v483 = vadd.f32 0.0, %v482
      %v484 = vpop.f32.mrb[0].mxu0
      %485 = vmatprep.mubr.f32.mxu0 0.0
      %486 = vmatmul.mubr.f32.gmra.mrb[0].mxu0 %v294
      %v487 = vpop.f32.mrb[0].mxu0
      %v488 = vadd.f32 0.0, %v487
      %v489 = vpop.f32.mrb[0].mxu0
      %490 = vmatprep.mubr.f32.mxu0 0.0
      %491 = vmatmul.mubr.f32.gmra.mrb[0].mxu0 %v297
      %v492 = vpop.f32.mrb[0].mxu0
      %v493 = vadd.f32 0.0, %v492
      %v494 = vpop.f32.mrb[0].mxu0
      %495 = vmatprep.mubr.f32.mxu0 0.0
      %496 = vmatmul.mubr.f32.gmra.mrb[0].mxu0 %v300
      %v497 = vpop.f32.mrb[0].mxu0
      %v498 = vadd.f32 0.0, %v497
      %v499 = vpop.f32.mrb[0].mxu0
      %500 = vmatprep.mubr.f32.mxu0 0.0
      %501 = vmatmul.mubr.f32.gmra.mrb[0].mxu0 %v303
      %v502 = vpop.f32.mrb[0].mxu0
      %v503 = vadd.f32 0.0, %v502
      %v504 = vpop.f32.mrb[0].mxu0
      %505 = vmatprep.mubr.f32.mxu0 0.0
      %506 = vmatmul.mubr.f32.gmra.mrb[0].mxu0 %v306
      %v507 = vpop.f32.mrb[0].mxu0
      %v508 = vadd.f32 0.0, %v507
      %v509 = vpop.f32.mrb[0].mxu0
      %510 = vmatprep.mubr.f32.mxu0 0.0
      %511 = vmatmul.mubr.f32.gmra.mrb[0].mxu0 %v309
      %v512 = vpop.f32.mrb[0].mxu0
      %v513 = vadd.f32 0.0, %v512
      %v514 = vpop.f32.mrb[0].mxu0
      %515 = vmatprep.mubr.f32.mxu0 0.0
      %516 = vmatmul.mubr.f32.gmra.mrb[0].mxu0 %v312
      %v517 = vpop.f32.mrb[0].mxu0
      %v518 = vadd.f32 0.0, %v517
      %v519 = vpop.f32.mrb[0].mxu0
      %520 = vmatprep.mubr.f32.mxu0 0.0
      %521 = vmatmul.mubr.f32.gmra.mrb[0].mxu0 %v315
      %v522 = vpop.f32.mrb[0].mxu0
      %v523 = vadd.f32 0.0, %v522
      %v524 = vpop.f32.mrb[0].mxu0
      %525 = vmatprep.mubr.f32.mxu0 0.0
      %526 = vmatmul.mubr.f32.gmra.mrb[0].mxu0 %v318
      %v527 = vpop.f32.mrb[0].mxu0
      %v528 = vadd.f32 0.0, %v527
      %v529 = vpop.f32.mrb[0].mxu0
      %530 = vmatprep.mubr.f32.mxu0 0.0
      %531 = vmatmul.mubr.f32.gmra.mrb[0].mxu0 %v321
      %v532 = vpop.f32.mrb[0].mxu0
      %v533 = vadd.f32 0.0, %v532
      %v534 = vpop.f32.mrb[0].mxu0
      %535 = vmatprep.mubr.f32.mxu0 0.0
      %536 = vmatmul.mubr.f32.gmra.mrb[0].mxu0 %v324
      %v537 = vpop.f32.mrb[0].mxu0
      %v538 = vadd.f32 0.0, %v537
      %v539 = vpop.f32.mrb[0].mxu0
      %540 = vmatprep.mubr.f32.mxu0 0.0
      %541 = vmatmul.mubr.f32.gmra.mrb[0].mxu0 %v327
      %v542 = vpop.f32.mrb[0].mxu0
      %v543 = vadd.f32 0.0, %v542
      %v544 = vpop.f32.mrb[0].mxu0
      %545 = vmatprep.mubr.f32.mxu0 0.0
      %546 = vmatmul.mubr.f32.gmra.mrb[0].mxu0 %v330
      %v547 = vpop.f32.mrb[0].mxu0
      %v548 = vadd.f32 0.0, %v547
      %v549 = vpop.f32.mrb[0].mxu0
      %550 = vdwg.mxu0
      %vm575 = vcmask 1046528
      %v576 = vrot.slane %v403, 1
      %v577 = vrot.slane %v408, 1
      %v578 = vsel %vm575, %v576, %v577
      %v579 = vrot.slane %v413, 1
      %v580 = vsel %vm575, %v577, %v579
      %v581 = vrot.slane %v418, 1
      %v582 = vrot.slane %v423, 1
      %v583 = vsel %vm575, %v581, %v582
      %v584 = vrot.slane %v428, 1
      %v585 = vsel %vm575, %v582, %v584
      %v586 = vrot.slane %v433, 1
      %v587 = vrot.slane %v438, 1
      %v588 = vsel %vm575, %v586, %v587
      %v589 = vrot.slane %v443, 1
      %v590 = vsel %vm575, %v587, %v589
      %v591 = vrot.slane %v448, 1
      %v592 = vrot.slane %v453, 1
      %v593 = vsel %vm575, %v591, %v592
      %v594 = vrot.slane %v458, 1
      %v595 = vsel %vm575, %v592, %v594
      %v596 = vrot.slane %v463, 1
      %v597 = vrot.slane %v468, 1
      %v598 = vsel %vm575, %v596, %v597
      %v599 = vrot.slane %v473, 1
      %v600 = vsel %vm575, %v597, %v599
      %v601 = vrot.slane %v478, 1
      %v602 = vrot.slane %v483, 1
      %v603 = vsel %vm575, %v601, %v602
      %v604 = vrot.slane %v488, 1
      %v605 = vsel %vm575, %v602, %v604
      %v606 = vrot.slane %v493, 1
      %v607 = vrot.slane %v498, 1
      %v608 = vsel %vm575, %v606, %v607
      %v609 = vrot.slane %v503, 1
      %v610 = vsel %vm575, %v607, %v609
      %v611 = vrot.slane %v508, 1
      %v612 = vrot.slane %v513, 1
      %v613 = vsel %vm575, %v611, %v612
      %v614 = vrot.slane %v518, 1
      %v615 = vsel %vm575, %v612, %v614
      %616 = vrot.lane.b32.xlu0 %v578, 120
      %v617 = vpop.permute.xlu0 %616
      %618 = vrot.lane.b32.xlu0 %v580, 120
      %v619 = vpop.permute.xlu0 %618
      %620 = vrot.lane.b32.xlu0 %v583, 120
      %v621 = vpop.permute.xlu0 %620
      %622 = vrot.lane.b32.xlu0 %v585, 120
      %v623 = vpop.permute.xlu0 %622
      %624 = vrot.lane.b32.xlu0 %v588, 120
      %v625 = vpop.permute.xlu0 %624
      %626 = vrot.lane.b32.xlu0 %v590, 120
      %v627 = vpop.permute.xlu0 %626
      %628 = vrot.lane.b32.xlu0 %v593, 120
      %v629 = vpop.permute.xlu0 %628
      %630 = vrot.lane.b32.xlu0 %v595, 120
      %v631 = vpop.permute.xlu0 %630
      %632 = vrot.lane.b32.xlu0 %v598, 120
      %v633 = vpop.permute.xlu0 %632
      %634 = vrot.lane.b32.xlu0 %v600, 120
      %v635 = vpop.permute.xlu0 %634
      %636 = vrot.lane.b32.xlu0 %v603, 120
      %v637 = vpop.permute.xlu0 %636
      %638 = vrot.lane.b32.xlu0 %v605, 120
      %v639 = vpop.permute.xlu0 %638
      %640 = vrot.lane.b32.xlu0 %v608, 120
      %v641 = vpop.permute.xlu0 %640
      %642 = vrot.lane.b32.xlu0 %v610, 120
      %v643 = vpop.permute.xlu0 %642
      %644 = vrot.lane.b32.xlu0 %v613, 120
      %v645 = vpop.permute.xlu0 %644
      %646 = vrot.lane.b32.xlu0 %v615, 120
      %v647 = vpop.permute.xlu0 %646
      %v664 = vadd.f32 %v403, %v617
      %v665 = vadd.f32 %v408, %v619
      %v666 = vadd.f32 %v418, %v621
      %v667 = vadd.f32 %v423, %v623
      %v668 = vadd.f32 %v433, %v625
      %v669 = vadd.f32 %v438, %v627
      %v670 = vadd.f32 %v448, %v629
      %v671 = vadd.f32 %v453, %v631
      %v672 = vadd.f32 %v463, %v633
      %v673 = vadd.f32 %v468, %v635
      %v674 = vadd.f32 %v478, %v637
      %v675 = vadd.f32 %v483, %v639
      %v676 = vadd.f32 %v493, %v641
      %v677 = vadd.f32 %v498, %v643
      %v678 = vadd.f32 %v508, %v645
      %v679 = vadd.f32 %v513, %v647
      %vm680 = vcmask 1045504
      %v681 = vrot.slane %v403, 2
      %v682 = vrot.slane %v408, 2
      %v683 = vsel %vm680, %v681, %v682
      %v684 = vrot.slane %v413, 2
      %v685 = vsel %vm680, %v682, %v684
      %v686 = vrot.slane %v418, 2
      %v687 = vrot.slane %v423, 2
      %v688 = vsel %vm680, %v686, %v687
      %v689 = vrot.slane %v428, 2
      %v690 = vsel %vm680, %v687, %v689
      %v691 = vrot.slane %v433, 2
      %v692 = vrot.slane %v438, 2
      %v693 = vsel %vm680, %v691, %v692
      %v694 = vrot.slane %v443, 2
      %v695 = vsel %vm680, %v692, %v694
      %v696 = vrot.slane %v448, 2
      %v697 = vrot.slane %v453, 2
      %v698 = vsel %vm680, %v696, %v697
      %v699 = vrot.slane %v458, 2
      %v700 = vsel %vm680, %v697, %v699
      %v701 = vrot.slane %v463, 2
      %v702 = vrot.slane %v468, 2
      %v703 = vsel %vm680, %v701, %v702
      %v704 = vrot.slane %v473, 2
      %v705 = vsel %vm680, %v702, %v704
      %v706 = vrot.slane %v478, 2
      %v707 = vrot.slane %v483, 2
      %v708 = vsel %vm680, %v706, %v707
      %v709 = vrot.slane %v488, 2
      %v710 = vsel %vm680, %v707, %v709
      %v711 = vrot.slane %v493, 2
      %v712 = vrot.slane %v498, 2
      %v713 = vsel %vm680, %v711, %v712
      %v714 = vrot.slane %v503, 2
      %v715 = vsel %vm680, %v712, %v714
      %v716 = vrot.slane %v508, 2
      %v717 = vrot.slane %v513, 2
      %v718 = vsel %vm680, %v716, %v717
      %v719 = vrot.slane %v518, 2
      %v720 = vsel %vm680, %v717, %v719
      %721 = vrot.lane.b32.xlu0 %v683, 112
      %v722 = vpop.permute.xlu0 %721
      %723 = vrot.lane.b32.xlu0 %v685, 112
      %v724 = vpop.permute.xlu0 %723
      %725 = vrot.lane.b32.xlu0 %v688, 112
      %v726 = vpop.permute.xlu0 %725
      %727 = vrot.lane.b32.xlu0 %v690, 112
      %v728 = vpop.permute.xlu0 %727
      %729 = vrot.lane.b32.xlu0 %v693, 112
      %v730 = vpop.permute.xlu0 %729
      %731 = vrot.lane.b32.xlu0 %v695, 112
      %v732 = vpop.permute.xlu0 %731
      %733 = vrot.lane.b32.xlu0 %v698, 112
      %v734 = vpop.permute.xlu0 %733
      %735 = vrot.lane.b32.xlu0 %v700, 112
      %v736 = vpop.permute.xlu0 %735
      %737 = vrot.lane.b32.xlu0 %v703, 112
      %v738 = vpop.permute.xlu0 %737
      %739 = vrot.lane.b32.xlu0 %v705, 112
      %v740 = vpop.permute.xlu0 %739
      %741 = vrot.lane.b32.xlu0 %v708, 112
      %v742 = vpop.permute.xlu0 %741
      %743 = vrot.lane.b32.xlu0 %v710, 112
      %v744 = vpop.permute.xlu0 %743
      %745 = vrot.lane.b32.xlu0 %v713, 112
      %v746 = vpop.permute.xlu0 %745
      %747 = vrot.lane.b32.xlu0 %v715, 112
      %v748 = vpop.permute.xlu0 %747
      %749 = vrot.lane.b32.xlu0 %v718, 112
      %v750 = vpop.permute.xlu0 %749
      %751 = vrot.lane.b32.xlu0 %v720, 112
      %v752 = vpop.permute.xlu0 %751
      %v769 = vadd.f32 %v664, %v722
      %v770 = vadd.f32 %v665, %v724
      %v771 = vadd.f32 %v666, %v726
      %v772 = vadd.f32 %v667, %v728
      %v773 = vadd.f32 %v668, %v730
      %v774 = vadd.f32 %v669, %v732
      %v775 = vadd.f32 %v670, %v734
      %v776 = vadd.f32 %v671, %v736
      %v777 = vadd.f32 %v672, %v738
      %v778 = vadd.f32 %v673, %v740
      %v779 = vadd.f32 %v674, %v742
      %v780 = vadd.f32 %v675, %v744
      %v781 = vadd.f32 %v676, %v746
      %v782 = vadd.f32 %v677, %v748
      %v783 = vadd.f32 %v678, %v750
      %v784 = vadd.f32 %v679, %v752
      %787 = vrot.lane.b32.xlu0 %v418, 104
      %v788 = vpop.permute.xlu0 %787
      %789 = vrot.lane.b32.xlu0 %v423, 104
      %v790 = vpop.permute.xlu0 %789
      %791 = vrot.lane.b32.xlu0 %v433, 104
      %v792 = vpop.permute.xlu0 %791
      %793 = vrot.lane.b32.xlu0 %v438, 104
      %v794 = vpop.permute.xlu0 %793
      %795 = vrot.lane.b32.xlu0 %v448, 104
      %v796 = vpop.permute.xlu0 %795
      %797 = vrot.lane.b32.xlu0 %v453, 104
      %v798 = vpop.permute.xlu0 %797
      %799 = vrot.lane.b32.xlu0 %v463, 104
      %v800 = vpop.permute.xlu0 %799
      %801 = vrot.lane.b32.xlu0 %v468, 104
      %v802 = vpop.permute.xlu0 %801
      %803 = vrot.lane.b32.xlu0 %v478, 104
      %v804 = vpop.permute.xlu0 %803
      %805 = vrot.lane.b32.xlu0 %v483, 104
      %v806 = vpop.permute.xlu0 %805
      %807 = vrot.lane.b32.xlu0 %v493, 104
      %v808 = vpop.permute.xlu0 %807
      %809 = vrot.lane.b32.xlu0 %v498, 104
      %v810 = vpop.permute.xlu0 %809
      %811 = vrot.lane.b32.xlu0 %v508, 104
      %v812 = vpop.permute.xlu0 %811
      %813 = vrot.lane.b32.xlu0 %v513, 104
      %v814 = vpop.permute.xlu0 %813
      %815 = vrot.lane.b32.xlu0 %v523, 104
      %v816 = vpop.permute.xlu0 %815
      %817 = vrot.lane.b32.xlu0 %v528, 104
      %v818 = vpop.permute.xlu0 %817
      %v835 = vadd.f32 %v769, %v788
      %v836 = vadd.f32 %v770, %v790
      %v837 = vadd.f32 %v771, %v792
      %v838 = vadd.f32 %v772, %v794
      %v839 = vadd.f32 %v773, %v796
      %v840 = vadd.f32 %v774, %v798
      %v841 = vadd.f32 %v775, %v800
      %v842 = vadd.f32 %v776, %v802
      %v843 = vadd.f32 %v777, %v804
      %v844 = vadd.f32 %v778, %v806
      %v845 = vadd.f32 %v779, %v808
      %v846 = vadd.f32 %v780, %v810
      %v847 = vadd.f32 %v781, %v812
      %v848 = vadd.f32 %v782, %v814
      %v849 = vadd.f32 %v783, %v816
      %v850 = vadd.f32 %v784, %v818
      %v852 = vrot.slane %v523, 1
      %v853 = vrot.slane %v528, 1
      %v854 = vsel %vm575, %v852, %v853
      %v855 = vrot.slane %v533, 1
      %v856 = vsel %vm575, %v853, %v855
      %857 = vrot.lane.b32.xlu0 %v583, 96
      %v858 = vpop.permute.xlu0 %857
      %859 = vrot.lane.b32.xlu0 %v585, 96
      %v860 = vpop.permute.xlu0 %859
      %861 = vrot.lane.b32.xlu0 %v588, 96
      %v862 = vpop.permute.xlu0 %861
      %863 = vrot.lane.b32.xlu0 %v590, 96
      %v864 = vpop.permute.xlu0 %863
      %865 = vrot.lane.b32.xlu0 %v593, 96
      %v866 = vpop.permute.xlu0 %865
      %867 = vrot.lane.b32.xlu0 %v595, 96
      %v868 = vpop.permute.xlu0 %867
      %869 = vrot.lane.b32.xlu0 %v598, 96
      %v870 = vpop.permute.xlu0 %869
      %871 = vrot.lane.b32.xlu0 %v600, 96
      %v872 = vpop.permute.xlu0 %871
      %873 = vrot.lane.b32.xlu0 %v603, 96
      %v874 = vpop.permute.xlu0 %873
      %875 = vrot.lane.b32.xlu0 %v605, 96
      %v876 = vpop.permute.xlu0 %875
      %877 = vrot.lane.b32.xlu0 %v608, 96
      %v878 = vpop.permute.xlu0 %877
      %879 = vrot.lane.b32.xlu0 %v610, 96
      %v880 = vpop.permute.xlu0 %879
      %881 = vrot.lane.b32.xlu0 %v613, 96
      %v882 = vpop.permute.xlu0 %881
      %883 = vrot.lane.b32.xlu0 %v615, 96
      %v884 = vpop.permute.xlu0 %883
      %885 = vrot.lane.b32.xlu0 %v854, 96
      %v886 = vpop.permute.xlu0 %885
      %887 = vrot.lane.b32.xlu0 %v856, 96
      %v888 = vpop.permute.xlu0 %887
      %v905 = vadd.f32 %v835, %v858
      %v906 = vadd.f32 %v836, %v860
      %v907 = vadd.f32 %v837, %v862
      %v908 = vadd.f32 %v838, %v864
      %v909 = vadd.f32 %v839, %v866
      %v910 = vadd.f32 %v840, %v868
      %v911 = vadd.f32 %v841, %v870
      %v912 = vadd.f32 %v842, %v872
      %v913 = vadd.f32 %v843, %v874
      %v914 = vadd.f32 %v844, %v876
      %v915 = vadd.f32 %v845, %v878
      %v916 = vadd.f32 %v846, %v880
      %v917 = vadd.f32 %v847, %v882
      %v918 = vadd.f32 %v848, %v884
      %v919 = vadd.f32 %v849, %v886
      %v920 = vadd.f32 %v850, %v888
      %v921 = vrot.slane %v523, 2
      %v922 = vrot.slane %v528, 2
      %v923 = vsel %vm680, %v921, %v922
      %v924 = vrot.slane %v533, 2
      %v925 = vsel %vm680, %v922, %v924
      %926 = vrot.lane.b32.xlu0 %v688, 88
      %v927 = vpop.permute.xlu0 %926
      %928 = vrot.lane.b32.xlu0 %v690, 88
      %v929 = vpop.permute.xlu0 %928
      %930 = vrot.lane.b32.xlu0 %v693, 88
      %v931 = vpop.permute.xlu0 %930
      %932 = vrot.lane.b32.xlu0 %v695, 88
      %v933 = vpop.permute.xlu0 %932
      %934 = vrot.lane.b32.xlu0 %v698, 88
      %v935 = vpop.permute.xlu0 %934
      %936 = vrot.lane.b32.xlu0 %v700, 88
      %v937 = vpop.permute.xlu0 %936
      %938 = vrot.lane.b32.xlu0 %v703, 88
      %v939 = vpop.permute.xlu0 %938
      %940 = vrot.lane.b32.xlu0 %v705, 88
      %v941 = vpop.permute.xlu0 %940
      %942 = vrot.lane.b32.xlu0 %v708, 88
      %v943 = vpop.permute.xlu0 %942
      %944 = vrot.lane.b32.xlu0 %v710, 88
      %v945 = vpop.permute.xlu0 %944
      %946 = vrot.lane.b32.xlu0 %v713, 88
      %v947 = vpop.permute.xlu0 %946
      %948 = vrot.lane.b32.xlu0 %v715, 88
      %v949 = vpop.permute.xlu0 %948
      %950 = vrot.lane.b32.xlu0 %v718, 88
      %v951 = vpop.permute.xlu0 %950
      %952 = vrot.lane.b32.xlu0 %v720, 88
      %v953 = vpop.permute.xlu0 %952
      %954 = vrot.lane.b32.xlu0 %v923, 88
      %v955 = vpop.permute.xlu0 %954
      %956 = vrot.lane.b32.xlu0 %v925, 88
      %v957 = vpop.permute.xlu0 %956
      %v974 = vadd.f32 %v905, %v927
      %v975 = vadd.f32 %v906, %v929
      %v976 = vadd.f32 %v907, %v931
      %v977 = vadd.f32 %v908, %v933
      %v978 = vadd.f32 %v909, %v935
      %v979 = vadd.f32 %v910, %v937
      %v980 = vadd.f32 %v911, %v939
      %v981 = vadd.f32 %v912, %v941
      %v982 = vadd.f32 %v913, %v943
      %v983 = vadd.f32 %v914, %v945
      %v984 = vadd.f32 %v915, %v947
      %v985 = vadd.f32 %v916, %v949
      %v986 = vadd.f32 %v917, %v951
      %v987 = vadd.f32 %v918, %v953
      %v988 = vadd.f32 %v919, %v955
      %v989 = vadd.f32 %v920, %v957
      %992 = vrot.lane.b32.xlu0 %v433, 80
      %v993 = vpop.permute.xlu0 %992
      %994 = vrot.lane.b32.xlu0 %v438, 80
      %v995 = vpop.permute.xlu0 %994
      %996 = vrot.lane.b32.xlu0 %v448, 80
      %v997 = vpop.permute.xlu0 %996
      %998 = vrot.lane.b32.xlu0 %v453, 80
      %v999 = vpop.permute.xlu0 %998
      %1000 = vrot.lane.b32.xlu0 %v463, 80
      %v1001 = vpop.permute.xlu0 %1000
      %1002 = vrot.lane.b32.xlu0 %v468, 80
      %v1003 = vpop.permute.xlu0 %1002
      %1004 = vrot.lane.b32.xlu0 %v478, 80
      %v1005 = vpop.permute.xlu0 %1004
      %1006 = vrot.lane.b32.xlu0 %v483, 80
      %v1007 = vpop.permute.xlu0 %1006
      %1008 = vrot.lane.b32.xlu0 %v493, 80
      %v1009 = vpop.permute.xlu0 %1008
      %1010 = vrot.lane.b32.xlu0 %v498, 80
      %v1011 = vpop.permute.xlu0 %1010
      %1012 = vrot.lane.b32.xlu0 %v508, 80
      %v1013 = vpop.permute.xlu0 %1012
      %1014 = vrot.lane.b32.xlu0 %v513, 80
      %v1015 = vpop.permute.xlu0 %1014
      %1016 = vrot.lane.b32.xlu0 %v523, 80
      %v1017 = vpop.permute.xlu0 %1016
      %1018 = vrot.lane.b32.xlu0 %v528, 80
      %v1019 = vpop.permute.xlu0 %1018
      %1020 = vrot.lane.b32.xlu0 %v538, 80
      %v1021 = vpop.permute.xlu0 %1020
      %1022 = vrot.lane.b32.xlu0 %v543, 80
      %v1023 = vpop.permute.xlu0 %1022
      %v1040 = vadd.f32 %v974, %v993
      %v1041 = vadd.f32 %v975, %v995
      %v1042 = vadd.f32 %v976, %v997
      %v1043 = vadd.f32 %v977, %v999
      %v1044 = vadd.f32 %v978, %v1001
      %v1045 = vadd.f32 %v979, %v1003
      %v1046 = vadd.f32 %v980, %v1005
      %v1047 = vadd.f32 %v981, %v1007
      %v1048 = vadd.f32 %v982, %v1009
      %v1049 = vadd.f32 %v983, %v1011
      %v1050 = vadd.f32 %v984, %v1013
      %v1051 = vadd.f32 %v985, %v1015
      %v1052 = vadd.f32 %v986, %v1017
      %v1053 = vadd.f32 %v987, %v1019
      %v1054 = vadd.f32 %v988, %v1021
      %v1055 = vadd.f32 %v989, %v1023
      %v1057 = vrot.slane %v538, 1
      %v1058 = vrot.slane %v543, 1
      %v1059 = vsel %vm575, %v1057, %v1058
      %v1060 = vrot.slane %v548, 1
      %v1061 = vsel %vm575, %v1058, %v1060
      %1062 = vrot.lane.b32.xlu0 %v588, 72
      %v1063 = vpop.permute.xlu0 %1062
      %1064 = vrot.lane.b32.xlu0 %v590, 72
      %v1065 = vpop.permute.xlu0 %1064
      %1066 = vrot.lane.b32.xlu0 %v593, 72
      %v1067 = vpop.permute.xlu0 %1066
      %1068 = vrot.lane.b32.xlu0 %v595, 72
      %v1069 = vpop.permute.xlu0 %1068
      %1070 = vrot.lane.b32.xlu0 %v598, 72
      %v1071 = vpop.permute.xlu0 %1070
      %1072 = vrot.lane.b32.xlu0 %v600, 72
      %v1073 = vpop.permute.xlu0 %1072
      %1074 = vrot.lane.b32.xlu0 %v603, 72
      %v1075 = vpop.permute.xlu0 %1074
      %1076 = vrot.lane.b32.xlu0 %v605, 72
      %v1077 = vpop.permute.xlu0 %1076
      %1078 = vrot.lane.b32.xlu0 %v608, 72
      %v1079 = vpop.permute.xlu0 %1078
      %1080 = vrot.lane.b32.xlu0 %v610, 72
      %v1081 = vpop.permute.xlu0 %1080
      %1082 = vrot.lane.b32.xlu0 %v613, 72
      %v1083 = vpop.permute.xlu0 %1082
      %1084 = vrot.lane.b32.xlu0 %v615, 72
      %v1085 = vpop.permute.xlu0 %1084
      %1086 = vrot.lane.b32.xlu0 %v854, 72
      %v1087 = vpop.permute.xlu0 %1086
      %1088 = vrot.lane.b32.xlu0 %v856, 72
      %v1089 = vpop.permute.xlu0 %1088
      %1090 = vrot.lane.b32.xlu0 %v1059, 72
      %v1091 = vpop.permute.xlu0 %1090
      %1092 = vrot.lane.b32.xlu0 %v1061, 72
      %v1093 = vpop.permute.xlu0 %1092
      %v1110 = vadd.f32 %v1040, %v1063
      %v1111 = vadd.f32 %v1041, %v1065
      %v1112 = vadd.f32 %v1042, %v1067
      %v1113 = vadd.f32 %v1043, %v1069
      %v1114 = vadd.f32 %v1044, %v1071
      %v1115 = vadd.f32 %v1045, %v1073
      %v1116 = vadd.f32 %v1046, %v1075
      %v1117 = vadd.f32 %v1047, %v1077
      %v1118 = vadd.f32 %v1048, %v1079
      %v1119 = vadd.f32 %v1049, %v1081
      %v1120 = vadd.f32 %v1050, %v1083
      %v1121 = vadd.f32 %v1051, %v1085
      %v1122 = vadd.f32 %v1052, %v1087
      %v1123 = vadd.f32 %v1053, %v1089
      %v1124 = vadd.f32 %v1054, %v1091
      %v1125 = vadd.f32 %v1055, %v1093
      %v1126 = vrot.slane %v538, 2
      %v1127 = vrot.slane %v543, 2
      %v1128 = vsel %vm680, %v1126, %v1127
      %v1129 = vrot.slane %v548, 2
      %v1130 = vsel %vm680, %v1127, %v1129
      %1131 = vrot.lane.b32.xlu0 %v693, 64
      %v1132 = vpop.permute.xlu0 %1131
      %1133 = vrot.lane.b32.xlu0 %v695, 64
      %v1134 = vpop.permute.xlu0 %1133
      %1135 = vrot.lane.b32.xlu0 %v698, 64
      %v1136 = vpop.permute.xlu0 %1135
      %1137 = vrot.lane.b32.xlu0 %v700, 64
      %v1138 = vpop.permute.xlu0 %1137
      %1139 = vrot.lane.b32.xlu0 %v703, 64
      %v1140 = vpop.permute.xlu0 %1139
      %1141 = vrot.lane.b32.xlu0 %v705, 64
      %v1142 = vpop.permute.xlu0 %1141
      %1143 = vrot.lane.b32.xlu0 %v708, 64
      %v1144 = vpop.permute.xlu0 %1143
      %1145 = vrot.lane.b32.xlu0 %v710, 64
      %v1146 = vpop.permute.xlu0 %1145
      %1147 = vrot.lane.b32.xlu0 %v713, 64
      %v1148 = vpop.permute.xlu0 %1147
      %1149 = vrot.lane.b32.xlu0 %v715, 64
      %v1150 = vpop.permute.xlu0 %1149
      %1151 = vrot.lane.b32.xlu0 %v718, 64
      %v1152 = vpop.permute.xlu0 %1151
      %1153 = vrot.lane.b32.xlu0 %v720, 64
      %v1154 = vpop.permute.xlu0 %1153
      %1155 = vrot.lane.b32.xlu0 %v923, 64
      %v1156 = vpop.permute.xlu0 %1155
      %1157 = vrot.lane.b32.xlu0 %v925, 64
      %v1158 = vpop.permute.xlu0 %1157
      %1159 = vrot.lane.b32.xlu0 %v1128, 64
      %v1160 = vpop.permute.xlu0 %1159
      %1161 = vrot.lane.b32.xlu0 %v1130, 64
      %v1162 = vpop.permute.xlu0 %1161
      %v1179 = vadd.f32 %v1110, %v1132
      %v1180 = vadd.f32 %v1111, %v1134
      %v1181 = vadd.f32 %v1112, %v1136
      %v1182 = vadd.f32 %v1113, %v1138
      %v1183 = vadd.f32 %v1114, %v1140
      %v1184 = vadd.f32 %v1115, %v1142
      %v1185 = vadd.f32 %v1116, %v1144
      %v1186 = vadd.f32 %v1117, %v1146
      %v1187 = vadd.f32 %v1118, %v1148
      %v1188 = vadd.f32 %v1119, %v1150
      %v1189 = vadd.f32 %v1120, %v1152
      %v1190 = vadd.f32 %v1121, %v1154
      %v1191 = vadd.f32 %v1122, %v1156
      %v1192 = vadd.f32 %v1123, %v1158
      %v1193 = vadd.f32 %v1124, %v1160
      %v1194 = vadd.f32 %v1125, %v1162
      %v1195 = vld [vmem:[%s2] sm:$0x1]
      %v1197 = vlaneseq
      %v1198 = vshrl.u32 %v1197, 7
      %v1199 = vsub.s32 0, %v1198
      %v1200 = vrot.slane %v1195, %v1199
      %v1202 = vadd.f32 %v1179, %v1200
      %v1203 = vadd.f32 %v1180, %v1200
      %v1204 = vadd.f32 %v1181, %v1200
      %v1205 = vadd.f32 %v1182, %v1200
      %v1206 = vadd.f32 %v1183, %v1200
      %v1207 = vadd.f32 %v1184, %v1200
      %v1208 = vadd.f32 %v1185, %v1200
      %v1209 = vadd.f32 %v1186, %v1200
      %v1210 = vadd.f32 %v1187, %v1200
      %v1211 = vadd.f32 %v1188, %v1200
      %v1212 = vadd.f32 %v1189, %v1200
      %v1213 = vadd.f32 %v1190, %v1200
      %v1214 = vadd.f32 %v1191, %v1200
      %v1215 = vadd.f32 %v1192, %v1200
      %v1216 = vadd.f32 %v1193, %v1200
      %v1217 = vadd.f32 %v1194, %v1200
      %vm1218 = vcmask 64512
      %1219 = vst.msk [vmem:[%s208] sm:$0xff] %vm1218, %v1202
      %1220 = vst.msk [vmem:[%s208 + $0x8] sm:$0xff] %vm1218, %v1203
      %1221 = vst.msk [vmem:[%s208 + $0x10] sm:$0xff] %vm1218, %v1204
      %1222 = vst.msk [vmem:[%s208 + $0x18] sm:$0xff] %vm1218, %v1205
      %1223 = vst.msk [vmem:[%s208 + $0x20] sm:$0xff] %vm1218, %v1206
      %1224 = vst.msk [vmem:[%s208 + $0x28] sm:$0xff] %vm1218, %v1207
      %1225 = vst.msk [vmem:[%s208 + $0x30] sm:$0xff] %vm1218, %v1208
      %1226 = vst.msk [vmem:[%s208 + $0x38] sm:$0xff] %vm1218, %v1209
      %1227 = vst.msk [vmem:[%s208 + $0x40] sm:$0xff] %vm1218, %v1210
      %1228 = vst.msk [vmem:[%s208 + $0x48] sm:$0xff] %vm1218, %v1211
      %1229 = vst.msk [vmem:[%s208 + $0x50] sm:$0xff] %vm1218, %v1212
      %1230 = vst.msk [vmem:[%s208 + $0x58] sm:$0xff] %vm1218, %v1213
      %1231 = vst.msk [vmem:[%s208 + $0x60] sm:$0xff] %vm1218, %v1214
      %1232 = vst.msk [vmem:[%s208 + $0x68] sm:$0xff] %vm1218, %v1215
      %1233 = vst.msk [vmem:[%s208 + $0x70] sm:$0xff] %vm1218, %v1216
      %1234 = vst.msk [vmem:[%s208 + $0x78] sm:$0xff] %vm1218, %v1217
      %s1235 = smul.u32 8, %s19
      %p1236 = scmp.lt.s32.totalorder %s18, 1
      %s1237 = scalar_select %p1236, %s18, 1
      %p1238 = scmp.lt.s32.totalorder %s1235, 15
      %s1239 = scalar_select %p1238, %s1235, 15
      %s1240 = smul.addr %s1239, 2
      %s1241 = smul.addr %s1237, 32
      %s1242 = sadd.s32 %s1240, %s1241
      %s1243 = smul.addr %s1242, 8
      %s1244 = scalar_lea.vmem %s3, %s1243
      // Predicated region
      $region33: #{tpu_custom_call.1} parent=31 // pred_check
        %p1245 = pneg %p116
      $region34: #{tpu_custom_call.1} parent=31 // pred_check_branch
        %1247 = sbr.rel (%p1245) target = $region36
      $region35: #{tpu_custom_call.1} parent=31 // pred_region
        %s1248 = smul.u32 8, %s19
      $region36: #{tpu_custom_call.1} parent=31 // pred_fallthru
        _
    $region32: #{tpu_custom_call.1} parent=5 // pred_fallthru
      _
    %p1249 = scmp.le.s32.totalorder 2, %s9
    // Predicated region
    $region37: #{tpu_custom_call.1} parent=5 // pred_check
      %p1250 = pneg %p1249
    $region38: #{tpu_custom_call.1} parent=5 // pred_check_branch
      %1252 = sbr.rel (%p1250) target = $region40
    $region39: #{tpu_custom_call.1} parent=5 // pred_region
      %s1253 = ssub.s32 %s9, 2
      // Predicated region
      $region41: #{tpu_custom_call.1} parent=39 // pred_check
        %p1254 = pneg %p122
      $region42: #{tpu_custom_call.1} parent=39 // pred_check_branch
        %1256 = sbr.rel (%p1254) target = $region44
      $region43: #{tpu_custom_call.1} parent=39 // pred_region
        %s1257 = smul.u32 8, %s21
        %p1258 = scmp.lt.s32.totalorder %s20, 1
        %s1259 = scalar_select %p1258, %s20, 1
        %p1260 = scmp.lt.s32.totalorder %s1257, 15
        %s1261 = scalar_select %p1260, %s1257, 15
        %s1262 = smul.addr %s1261, 2
        %s1263 = smul.addr %s1259, 32
        %s1264 = sadd.s32 %s1262, %s1263
        %s1265 = smul.addr %s1264, 8
        %s1266 = scalar_lea.vmem %s3, %s1265
      $region44: #{tpu_custom_call.1} parent=39 // pred_fallthru
        _
    $region40: #{tpu_custom_call.1} parent=5 // pred_fallthru
      _
  $region6: #{tpu_custom_call.1} parent=0 // loop_footer
    %s13 = sadd.s32 1, %s9
  $region7: #{tpu_custom_call.1} parent=0 // loop_footer_branch
    %8 = sbr.rel target = $region3
  $region8: #{tpu_custom_call.1} parent=0 // loop_exit
    _

</llo_original>
